<compile_context>
chip_gen: v7x
topology: tpu7x:2x2x1
jax: 0.10.0
libtpu: 0.0.40
codegen_flags: <defaults>
</compile_context>

<pallas_src>
import jax
import jax.numpy as jnp
from jax.experimental import pallas as pl
from jax.experimental.pallas import tpu as pltpu


def gcmc_forward_kernel(zu_ref, zi_ref, p_ref, at_ref, rel_ref,
                        xui_ref, pui_ref):
    zu = zu_ref[...]          # (TB, D)    f32
    zi = zi_ref[...]          # (TB, D)    f32
    at = at_ref[...]          # (S, R)     == A.T
    rel = rel_ref[...]        # (1, R)

    num_basis = at.shape[0]

    # pui[b, r] = sum_s A[r, s] * sum_e (zu @ P[s])[b, e] * zi[b, e]
    pui = None
    for s in range(num_basis):                                   # trace-time unrolled, S small
        zq_s = jnp.dot(zu, p_ref[s], preferred_element_type=jnp.float32)   # (TB, D) MXU
        t_s = jnp.sum(zq_s * zi, axis=1, keepdims=True)                    # (TB, 1) lane reduce
        contrib = t_s * at[s:s + 1, :]                                      # (TB, R) broadcast
        pui = contrib if pui is None else pui + contrib
    pui_ref[...] = pui

    # softmax over the relation axis + weighted sum with `relations`
    m = jnp.max(pui, axis=1, keepdims=True)
    e = jnp.exp(pui - m)
    denom = jnp.sum(e, axis=1, keepdims=True)
    inv = pl.reciprocal(denom, approx=True)          # EUP slot (free alongside VPU work)
    inv = inv * (2.0 - denom * inv)                  # one Newton step -> ~full f32 precision
    sm = e * inv
    xui_ref[...] = jnp.sum(rel * sm, axis=1, keepdims=True)      # (TB, 1)


def _round_up(x, m):
    return ((x + m - 1) // m) * m


def gcmc_forward(zu, zi, P, A, relations, *, block_b=512):
    """zu, zi: (B, D); P: (S, D, D); A: (R, S); relations: (R,).

    Returns (xui (B,), pui (B, R)) -- same semantics as GCMCModel.forward.
    """
    B, D = zu.shape
    S = P.shape[0]
    R = A.shape[0]

    zu = zu.astype(jnp.float32)
    zi = zi.astype(jnp.float32)
    p_all = P.astype(jnp.float32)                       # (S, D, D)
    a_t = A.astype(jnp.float32).T                       # (S, R)
    rel2 = relations.astype(jnp.float32).reshape(1, R)

    # Batch tile: multiple of 8 sublanes (f32), capped at block_b; pad B up to a multiple.
    tb = max(8, min(_round_up(block_b, 8), _round_up(B, 8)))
    bp = _round_up(B, tb)
    if bp != B:
        pad = bp - B
        zu = jnp.pad(zu, ((0, pad), (0, 0)))
        zi = jnp.pad(zi, ((0, pad), (0, 0)))

    grid = (bp // tb,)

    cost = pl.CostEstimate(
        flops=(2 * bp * S * D * D        # zu @ P[s] for every basis
               + 3 * bp * S * D          # elementwise * + lane reduce
               + 3 * bp * S * R          # broadcast-accumulate
               + 8 * bp * R),            # softmax + weighted sum
        transcendentals=bp * R + bp,     # exp + reciprocal
        bytes_accessed=4 * (2 * bp * D + S * D * D + S * R + R + bp * R + bp),
    )

    xui, pui = pl.pallas_call(
        gcmc_forward_kernel,
        grid=grid,
        in_specs=[
            pl.BlockSpec((tb, D), lambda i: (i, 0)),           # zu   (tiled over batch)
            pl.BlockSpec((tb, D), lambda i: (i, 0)),           # zi   (tiled over batch)
            pl.BlockSpec((S, D, D), lambda i: (0, 0, 0)),      # P    (VMEM-resident)
            pl.BlockSpec((S, R), lambda i: (0, 0)),            # A.T  (VMEM-resident)
            pl.BlockSpec((1, R), lambda i: (0, 0)),            # relations
        ],
        out_specs=[
            pl.BlockSpec((tb, 1), lambda i: (i, 0)),           # xui
            pl.BlockSpec((tb, R), lambda i: (i, 0)),           # pui
        ],
        out_shape=[
            jax.ShapeDtypeStruct((bp, 1), jnp.float32),
            jax.ShapeDtypeStruct((bp, R), jnp.float32),
        ],
        compiler_params=pltpu.CompilerParams(
            dimension_semantics=("parallel",)),                # v7x: shard batch over 2 TCs
        cost_estimate=cost,
    )(zu, zi, p_all, a_t, rel2)

    return xui[:B, 0], pui[:B]


if __name__ == "__main__":
    # Small deterministic configuration consistent with the module:
    #   dense_layer_size[-1] = D, num_relations = R, num_basis = S, batch = B
    # B chosen to exercise batch tiling + padding (block_b=16 -> grid of 4 steps).
    B, D, R, S = 50, 32, 3, 2

    key = jax.random.PRNGKey(0)
    k_zu, k_zi, k_p, k_a = jax.random.split(key, 4)

    # "Propagated" embeddings (stand-in for propagate_embeddings output)
    zu = jax.random.normal(k_zu, (B, D), dtype=jnp.float32)
    zi = jax.random.normal(k_zi, (B, D), dtype=jnp.float32)

    # P[s]: orthogonal (D, D) basis matrices (mirrors orthogonal_ init)
    P_raw = jax.random.normal(k_p, (S, D, D), dtype=jnp.float32)
    P = jnp.stack([jnp.linalg.qr(P_raw[s])[0] for s in range(S)], axis=0)

    # A[r]: uniform(0,1) per-relation basis coefficients (mirrors uniform_ init)
    A = jax.random.uniform(k_a, (R, S), dtype=jnp.float32)

    # relations (rating values), e.g. [1, 2, 3]
    relations = jnp.arange(1, R + 1, dtype=jnp.float32)

    xui, pui = gcmc_forward(zu, zi, P, A, relations, block_b=16)
    jax.block_until_ready((xui, pui))

    # Pure-JAX reference check
    Q = jnp.einsum('rs,sde->rde', A, P)
    pui_ref = jnp.einsum('bd,rde,be->br', zu, Q, zi)
    sm_ref = jax.nn.softmax(pui_ref, axis=1)
    xui_ref = jnp.sum(relations[None, :] * sm_ref, axis=1)

    assert pui.shape == (B, R) and xui.shape == (B,)
    assert jnp.allclose(pui, pui_ref, atol=1e-3, rtol=1e-3), "pui mismatch"
    assert jnp.allclose(xui, xui_ref, atol=1e-3, rtol=1e-3), "xui mismatch"

    print("KERNEL_OK")
</pallas_src>

<mosaic_0001>
module attributes {stable_mosaic.version = 11 : i64} {
  func.func @gcmc_forward_kernel(%arg0: i32, %arg1: memref<16x32xf32, #tpu.memory_space<vmem>>, %arg2: memref<16x32xf32, #tpu.memory_space<vmem>>, %arg3: memref<2x32x32xf32, #tpu.memory_space<vmem>>, %arg4: memref<2x3xf32, #tpu.memory_space<vmem>>, %arg5: memref<1x3xf32, #tpu.memory_space<vmem>>, %arg6: memref<16x1xf32, #tpu.memory_space<vmem>>, %arg7: memref<16x3xf32, #tpu.memory_space<vmem>>) attributes {dimension_semantics = [#tpu.dimension_semantics<parallel>], iteration_bounds = array<i64: 4>, scalar_prefetch = 0 : i64, scratch_operands = 0 : i64, tpu.core_type = #tpu.core_type<tc>, window_params = [{transform_indices = @transform_0, window_bounds = array<i64: 16, 32>}, {transform_indices = @transform_1, window_bounds = array<i64: 16, 32>}, {pipeline_mode = #tpu.pipeline_mode<synchronous>, transform_indices = @transform_2, window_bounds = array<i64: 2, 32, 32>}, {pipeline_mode = #tpu.pipeline_mode<synchronous>, transform_indices = @transform_3, window_bounds = array<i64: 2, 3>}, {pipeline_mode = #tpu.pipeline_mode<synchronous>, transform_indices = @transform_4, window_bounds = array<i64: 1, 3>}, {transform_indices = @transform_5, window_bounds = array<i64: 16, 1>}, {transform_indices = @transform_6, window_bounds = array<i64: 16, 3>}]} {
    %c0 = arith.constant 0 : index
    %c0_0 = arith.constant 0 : index
    %0 = vector.load %arg1[%c0, %c0_0] : memref<16x32xf32, #tpu.memory_space<vmem>>, vector<16x32xf32>
    %c0_1 = arith.constant 0 : index
    %c0_2 = arith.constant 0 : index
    %1 = vector.load %arg2[%c0_1, %c0_2] : memref<16x32xf32, #tpu.memory_space<vmem>>, vector<16x32xf32>
    %c0_3 = arith.constant 0 : index
    %c0_4 = arith.constant 0 : index
    %2 = vector.load %arg4[%c0_3, %c0_4] : memref<2x3xf32, #tpu.memory_space<vmem>>, vector<2x3xf32>
    %c0_5 = arith.constant 0 : index
    %c0_6 = arith.constant 0 : index
    %3 = vector.load %arg5[%c0_5, %c0_6] : memref<1x3xf32, #tpu.memory_space<vmem>>, vector<1x3xf32>
    %c0_7 = arith.constant 0 : index
    %c0_8 = arith.constant 0 : index
    %c0_9 = arith.constant 0 : index
    %4 = vector.load %arg3[%c0_7, %c0_8, %c0_9] : memref<2x32x32xf32, #tpu.memory_space<vmem>>, vector<1x32x32xf32>
    %5 = vector.shape_cast %4 : vector<1x32x32xf32> to vector<32x32xf32>
    %cst = arith.constant dense<0.000000e+00> : vector<16x32xf32>
    %6 = tpu.matmul %0, %5, %cst {dimension_numbers = #tpu.dot_dimension_numbers<[1], [0], [0], [1], [0, 0, 1, 1], [], []>} : vector<16x32xf32>, vector<32x32xf32>, vector<16x32xf32> -> vector<16x32xf32>
    %7 = arith.mulf %6, %1 : vector<16x32xf32>
    %cst_10 = arith.constant dense<0.000000e+00> : vector<16xf32>
    %8 = vector.multi_reduction <add>, %7, %cst_10 [1] : vector<16x32xf32> to vector<16xf32>
    %9 = vector.shape_cast %8 : vector<16xf32> to vector<16x1xf32>
    %10 = vector.extract_strided_slice %2 {offsets = [0, 0], sizes = [1, 3], strides = [1, 1]} : vector<2x3xf32> to vector<1x3xf32>
    %11 = vector.broadcast %9 : vector<16x1xf32> to vector<16x3xf32>
    %12 = vector.broadcast %10 : vector<1x3xf32> to vector<16x3xf32>
    %13 = arith.mulf %11, %12 : vector<16x3xf32>
    %c1 = arith.constant 1 : index
    %c0_11 = arith.constant 0 : index
    %c0_12 = arith.constant 0 : index
    %14 = vector.load %arg3[%c1, %c0_11, %c0_12] : memref<2x32x32xf32, #tpu.memory_space<vmem>>, vector<1x32x32xf32>
    %15 = vector.shape_cast %14 : vector<1x32x32xf32> to vector<32x32xf32>
    %cst_13 = arith.constant dense<0.000000e+00> : vector<16x32xf32>
    %16 = tpu.matmul %0, %15, %cst_13 {dimension_numbers = #tpu.dot_dimension_numbers<[1], [0], [0], [1], [0, 0, 1, 1], [], []>} : vector<16x32xf32>, vector<32x32xf32>, vector<16x32xf32> -> vector<16x32xf32>
    %17 = arith.mulf %16, %1 : vector<16x32xf32>
    %cst_14 = arith.constant dense<0.000000e+00> : vector<16xf32>
    %18 = vector.multi_reduction <add>, %17, %cst_14 [1] : vector<16x32xf32> to vector<16xf32>
    %19 = vector.shape_cast %18 : vector<16xf32> to vector<16x1xf32>
    %20 = vector.extract_strided_slice %2 {offsets = [1, 0], sizes = [1, 3], strides = [1, 1]} : vector<2x3xf32> to vector<1x3xf32>
    %21 = vector.broadcast %19 : vector<16x1xf32> to vector<16x3xf32>
    %22 = vector.broadcast %20 : vector<1x3xf32> to vector<16x3xf32>
    %23 = arith.mulf %21, %22 : vector<16x3xf32>
    %24 = arith.addf %13, %23 : vector<16x3xf32>
    %c0_15 = arith.constant 0 : index
    %c0_16 = arith.constant 0 : index
    %25 = vector.load %arg7[%c0_15, %c0_16] : memref<16x3xf32, #tpu.memory_space<vmem>>, vector<16x3xf32>
    tpu.vector_store %arg7[%c0_15, %c0_16], %24 {strides = array<i32>} : memref<16x3xf32, #tpu.memory_space<vmem>>, vector<16x3xf32>,
    %cst_17 = arith.constant dense<0xFF800000> : vector<16xf32>
    %26 = vector.multi_reduction <maximumf>, %24, %cst_17 [1] : vector<16x3xf32> to vector<16xf32>
    %27 = vector.shape_cast %26 : vector<16xf32> to vector<16x1xf32>
    %28 = vector.broadcast %27 : vector<16x1xf32> to vector<16x3xf32>
    %29 = arith.subf %24, %28 : vector<16x3xf32>
    %30 = math.exp %29 : vector<16x3xf32>
    %cst_18 = arith.constant dense<0.000000e+00> : vector<16xf32>
    %31 = vector.multi_reduction <add>, %30, %cst_18 [1] : vector<16x3xf32> to vector<16xf32>
    %32 = vector.shape_cast %31 : vector<16xf32> to vector<16x1xf32>
    %33 = tpu.reciprocal %32 {approx = true} : vector<16x1xf32> -> vector<16x1xf32>
    %34 = arith.mulf %32, %33 : vector<16x1xf32>
    %cst_19 = arith.constant 2.000000e+00 : f32
    %35 = vector.broadcast %cst_19 : f32 to vector<16x1xf32>
    %36 = arith.subf %35, %34 : vector<16x1xf32>
    %37 = arith.mulf %33, %36 : vector<16x1xf32>
    %38 = vector.broadcast %37 : vector<16x1xf32> to vector<16x3xf32>
    %39 = arith.mulf %30, %38 : vector<16x3xf32>
    %40 = vector.broadcast %3 : vector<1x3xf32> to vector<16x3xf32>
    %41 = arith.mulf %40, %39 : vector<16x3xf32>
    %cst_20 = arith.constant dense<0.000000e+00> : vector<16xf32>
    %42 = vector.multi_reduction <add>, %41, %cst_20 [1] : vector<16x3xf32> to vector<16xf32>
    %43 = vector.shape_cast %42 : vector<16xf32> to vector<16x1xf32>
    %c0_21 = arith.constant 0 : index
    %c0_22 = arith.constant 0 : index
    %44 = vector.load %arg6[%c0_21, %c0_22] : memref<16x1xf32, #tpu.memory_space<vmem>>, vector<16x1xf32>
    tpu.vector_store %arg6[%c0_21, %c0_22], %43 {strides = array<i32>} : memref<16x1xf32, #tpu.memory_space<vmem>>, vector<16x1xf32>,
    return
  }
  func.func @transform_0(%arg0: i32) -> (i32, i32) {
    %c0_i32 = arith.constant 0 : i32
    %c0_i32_0 = arith.constant 0 : i32
    return %arg0, %c0_i32 : i32, i32
  }
  func.func @transform_1(%arg0: i32) -> (i32, i32) {
    %c0_i32 = arith.constant 0 : i32
    %c0_i32_0 = arith.constant 0 : i32
    return %arg0, %c0_i32 : i32, i32
  }
  func.func @transform_2(%arg0: i32) -> (i32, i32, i32) {
    %c0_i32 = arith.constant 0 : i32
    %c0_i32_0 = arith.constant 0 : i32
    %c0_i32_1 = arith.constant 0 : i32
    %c0_i32_2 = arith.constant 0 : i32
    return %c0_i32, %c0_i32_0, %c0_i32_1 : i32, i32, i32
  }
  func.func @transform_3(%arg0: i32) -> (i32, i32) {
    %c0_i32 = arith.constant 0 : i32
    %c0_i32_0 = arith.constant 0 : i32
    %c0_i32_1 = arith.constant 0 : i32
    return %c0_i32, %c0_i32_0 : i32, i32
  }
  func.func @transform_4(%arg0: i32) -> (i32, i32) {
    %c0_i32 = arith.constant 0 : i32
    %c0_i32_0 = arith.constant 0 : i32
    %c0_i32_1 = arith.constant 0 : i32
    return %c0_i32, %c0_i32_0 : i32, i32
  }
  func.func @transform_5(%arg0: i32) -> (i32, i32) {
    %c0_i32 = arith.constant 0 : i32
    %c0_i32_0 = arith.constant 0 : i32
    return %arg0, %c0_i32 : i32, i32
  }
  func.func @transform_6(%arg0: i32) -> (i32, i32) {
    %c0_i32 = arith.constant 0 : i32
    %c0_i32_0 = arith.constant 0 : i32
    return %arg0, %c0_i32 : i32, i32
  }
}

</mosaic_0001>

<llo_original>
// kernel: tpu_custom_call.1
$region0: #{tpu_custom_call.1}
  #allocation0 [shape = 'u32[]', space=smem, size = 0x4, offset = 0x4, fixed_abs, tag = 'smem constant byte address 0x4 - core index']
  #allocation1 [shape = 'u32[144,128]{1,0:T(1,128)}', space=vmem, size = 0x12000, scoped, tag = 'internal scratch']
  %s0 = inlined_call_operand.vmem [shape: f32[64,32], index: 0, kind: input, shape index: {}]
  %s1 = inlined_call_operand.vmem [shape: f32[64,32], index: 1, kind: input, shape index: {}]
  %s2 = inlined_call_operand.vmem [shape: f32[2,32,32], index: 2, kind: input, shape index: {}]
  %s3 = inlined_call_operand.vmem [shape: f32[2,3], index: 3, kind: input, shape index: {}]
  %s4 = inlined_call_operand.vmem [shape: f32[1,3], index: 4, kind: input, shape index: {}]
  %s5 = inlined_call_operand.vmem [shape: f32[64,1], index: 5, kind: output, shape index: {0}]
  %s6 = inlined_call_operand.vmem [shape: f32[64,3], index: 6, kind: output, shape index: {1}]
  %7 = xla_tuple %s5, %s6
  %s8 = sld [smem:[#allocation0]]
  $region61: #{tpu_custom_call.1} parent=0
    _
  %s10 = ssub.s32 1, %s8
  %s11 = scalar_select 0, %s10, %s8
  loop: start=0, step=1, limit=6
  $region2: #{tpu_custom_call.1} parent=0 // loop_pre_header
    _
  $region3: #{tpu_custom_call.1} parent=0 // loop_header
    %s13 = sphi 0, %s17
    %p14 = scmp.ge.s32.totalorder %s13, 6
    %s23 = sphi 0, %s25
    %s26 = sphi 0, %s23
    %s27 = sphi 0, %s26
    %s43 = sphi 0, %s27
    %s49 = sphi 0, %s51
    %s52 = sphi 0, %s49
    %s53 = sphi 0, %s52
    %s69 = sphi 0, %s53
    %s73 = sphi 0, %s73
    %s75 = sphi 0, %s73
    %s76 = sphi 0, %s75
    %s90 = sphi 0, %s76
    %s94 = sphi 0, %s94
    %s96 = sphi 0, %s94
    %s97 = sphi 0, %s96
    %s111 = sphi 0, %s97
    %s115 = sphi 0, %s115
    %s117 = sphi 0, %s115
    %s118 = sphi 0, %s117
    %s132 = sphi 0, %s118
    %s138 = sphi 0, %s140
    %s141 = sphi 0, %s138
    %s142 = sphi 0, %s141
    %s158 = sphi 0, %s142
    %s164 = sphi 0, %s166
    %s167 = sphi 0, %s164
    %s168 = sphi 0, %s167
    %s184 = sphi 0, %s168
  $region4: #{tpu_custom_call.1} parent=0 // loop_header_branch
    %16 = sbr.rel (%p14) target = $region8
  $region5: #{tpu_custom_call.1} parent=0 // loop_body
    %s18 = ssub.s32 %s13, 1
    %s19 = ssub.s32 %s13, 2
    %s20 = sadd.s32 %s13, 1
    %s21 = ssub.s32 %s13, %s20
    %p22 = scmp.eq.s32.totalorder %s21, 0
    %s24 = sadd.s32 %s23, 1
    %s25 = scalar_select %p22, %s23, %s24
    %p28 = pneg %p22
    %p29 = scmp.eq.s32.totalorder %s13, 3
    %p30 = por %p28, %p29
    %p31 = scmp.ne.s32.totalorder %s23, %s26
    %p32 = scmp.eq.s32.totalorder %s13, 0
    %p33 = por %p31, %p32
    %p34 = scmp.ne.s32.totalorder %s23, %s26
    %p35 = scmp.eq.s32.totalorder %s18, 3
    %p36 = por %p34, %p35
    %p37 = scmp.ne.s32.totalorder %s26, %s27
    %p38 = scmp.eq.s32.totalorder %s18, 0
    %p39 = por %p37, %p38
    %p40 = scmp.ne.s32.totalorder %s26, %s27
    %p41 = scmp.eq.s32.totalorder %s19, 3
    %p42 = por %p40, %p41
    %p44 = scmp.ne.s32.totalorder %s27, %s43
    %p45 = scmp.eq.s32.totalorder %s19, 0
    %p46 = por %p44, %p45
    %s47 = ssub.s32 %s13, %s20
    %p48 = scmp.eq.s32.totalorder %s47, 0
    %s50 = sadd.s32 %s49, 1
    %s51 = scalar_select %p48, %s49, %s50
    %p54 = pneg %p48
    %p55 = scmp.eq.s32.totalorder %s13, 3
    %p56 = por %p54, %p55
    %p57 = scmp.ne.s32.totalorder %s49, %s52
    %p58 = scmp.eq.s32.totalorder %s13, 0
    %p59 = por %p57, %p58
    %p60 = scmp.ne.s32.totalorder %s49, %s52
    %p61 = scmp.eq.s32.totalorder %s18, 3
    %p62 = por %p60, %p61
    %p63 = scmp.ne.s32.totalorder %s52, %s53
    %p64 = scmp.eq.s32.totalorder %s18, 0
    %p65 = por %p63, %p64
    %p66 = scmp.ne.s32.totalorder %s52, %s53
    %p67 = scmp.eq.s32.totalorder %s19, 3
    %p68 = por %p66, %p67
    %p70 = scmp.ne.s32.totalorder %s53, %s69
    %p71 = scmp.eq.s32.totalorder %s19, 0
    %p72 = por %p70, %p71
    %s74 = sadd.s32 %s73, 1
    %p77 = scmp.eq.s32.totalorder %s13, 3
    %p78 = scmp.ne.s32.totalorder %s73, %s75
    %p79 = scmp.eq.s32.totalorder %s13, 0
    %p80 = por %p78, %p79
    %p81 = scmp.ne.s32.totalorder %s73, %s75
    %p82 = scmp.eq.s32.totalorder %s18, 3
    %p83 = por %p81, %p82
    %p84 = scmp.ne.s32.totalorder %s75, %s76
    %p85 = scmp.eq.s32.totalorder %s18, 0
    %p86 = por %p84, %p85
    %p87 = scmp.ne.s32.totalorder %s75, %s76
    %p88 = scmp.eq.s32.totalorder %s19, 3
    %p89 = por %p87, %p88
    %p91 = scmp.ne.s32.totalorder %s76, %s90
    %p92 = scmp.eq.s32.totalorder %s19, 0
    %p93 = por %p91, %p92
    %s95 = sadd.s32 %s94, 1
    %p98 = scmp.eq.s32.totalorder %s13, 3
    %p99 = scmp.ne.s32.totalorder %s94, %s96
    %p100 = scmp.eq.s32.totalorder %s13, 0
    %p101 = por %p99, %p100
    %p102 = scmp.ne.s32.totalorder %s94, %s96
    %p103 = scmp.eq.s32.totalorder %s18, 3
    %p104 = por %p102, %p103
    %p105 = scmp.ne.s32.totalorder %s96, %s97
    %p106 = scmp.eq.s32.totalorder %s18, 0
    %p107 = por %p105, %p106
    %p108 = scmp.ne.s32.totalorder %s96, %s97
    %p109 = scmp.eq.s32.totalorder %s19, 3
    %p110 = por %p108, %p109
    %p112 = scmp.ne.s32.totalorder %s97, %s111
    %p113 = scmp.eq.s32.totalorder %s19, 0
    %p114 = por %p112, %p113
    %s116 = sadd.s32 %s115, 1
    %p119 = scmp.eq.s32.totalorder %s13, 3
    %p120 = scmp.ne.s32.totalorder %s115, %s117
    %p121 = scmp.eq.s32.totalorder %s13, 0
    %p122 = por %p120, %p121
    %p123 = scmp.ne.s32.totalorder %s115, %s117
    %p124 = scmp.eq.s32.totalorder %s18, 3
    %p125 = por %p123, %p124
    %p126 = scmp.ne.s32.totalorder %s117, %s118
    %p127 = scmp.eq.s32.totalorder %s18, 0
    %p128 = por %p126, %p127
    %p129 = scmp.ne.s32.totalorder %s117, %s118
    %p130 = scmp.eq.s32.totalorder %s19, 3
    %p131 = por %p129, %p130
    %p133 = scmp.ne.s32.totalorder %s118, %s132
    %p134 = scmp.eq.s32.totalorder %s19, 0
    %p135 = por %p133, %p134
    %s136 = ssub.s32 %s13, %s20
    %p137 = scmp.eq.s32.totalorder %s136, 0
    %s139 = sadd.s32 %s138, 1
    %s140 = scalar_select %p137, %s138, %s139
    %p143 = pneg %p137
    %p144 = scmp.eq.s32.totalorder %s13, 3
    %p145 = por %p143, %p144
    %p146 = scmp.ne.s32.totalorder %s138, %s141
    %p147 = scmp.eq.s32.totalorder %s13, 0
    %p148 = por %p146, %p147
    %p149 = scmp.ne.s32.totalorder %s138, %s141
    %p150 = scmp.eq.s32.totalorder %s18, 3
    %p151 = por %p149, %p150
    %p152 = scmp.ne.s32.totalorder %s141, %s142
    %p153 = scmp.eq.s32.totalorder %s18, 0
    %p154 = por %p152, %p153
    %p155 = scmp.ne.s32.totalorder %s141, %s142
    %p156 = scmp.eq.s32.totalorder %s19, 3
    %p157 = por %p155, %p156
    %p159 = scmp.ne.s32.totalorder %s142, %s158
    %p160 = scmp.eq.s32.totalorder %s19, 0
    %p161 = por %p159, %p160
    %s162 = ssub.s32 %s13, %s20
    %p163 = scmp.eq.s32.totalorder %s162, 0
    %s165 = sadd.s32 %s164, 1
    %s166 = scalar_select %p163, %s164, %s165
    %p169 = pneg %p163
    %p170 = scmp.eq.s32.totalorder %s13, 3
    %p171 = por %p169, %p170
    %p172 = scmp.ne.s32.totalorder %s164, %s167
    %p173 = scmp.eq.s32.totalorder %s13, 0
    %p174 = por %p172, %p173
    %p175 = scmp.ne.s32.totalorder %s164, %s167
    %p176 = scmp.eq.s32.totalorder %s18, 3
    %p177 = por %p175, %p176
    %p178 = scmp.ne.s32.totalorder %s167, %s168
    %p179 = scmp.eq.s32.totalorder %s18, 0
    %p180 = por %p178, %p179
    %p181 = scmp.ne.s32.totalorder %s167, %s168
    %p182 = scmp.eq.s32.totalorder %s19, 3
    %p183 = por %p181, %p182
    %p185 = scmp.ne.s32.totalorder %s168, %s184
    %p186 = scmp.eq.s32.totalorder %s19, 0
    %p187 = por %p185, %p186
    %p188 = scmp.le.s32.totalorder 1, %s13
    %p189 = scmp.lt.s32.totalorder %s13, 5
    %p190 = pnand %p188, %p189
    %p191 = pneg %p190
    // Predicated region
    $region9: #{tpu_custom_call.1} parent=5 // pred_check
      _
    $region10: #{tpu_custom_call.1} parent=5 // pred_check_branch
      %193 = sbr.rel (%p190) target = $region12
    $region11: #{tpu_custom_call.1} parent=5 // pred_region
      %s194 = ssub.s32 %s13, 1
      // Predicated region
      $region13: #{tpu_custom_call.1} parent=11 // pred_check
        %p195 = pneg %p86
      $region14: #{tpu_custom_call.1} parent=11 // pred_check_branch
        %197 = sbr.rel (%p195) target = $region16
      $region15: #{tpu_custom_call.1} parent=11 // pred_region
        _
      $region16: #{tpu_custom_call.1} parent=11 // pred_fallthru
        _
      // Predicated region
      $region17: #{tpu_custom_call.1} parent=11 // pred_check
        %p198 = pneg %p107
      $region18: #{tpu_custom_call.1} parent=11 // pred_check_branch
        %200 = sbr.rel (%p198) target = $region20
      $region19: #{tpu_custom_call.1} parent=11 // pred_region
        _
      $region20: #{tpu_custom_call.1} parent=11 // pred_fallthru
        _
      // Predicated region
      $region21: #{tpu_custom_call.1} parent=11 // pred_check
        %p201 = pneg %p128
      $region22: #{tpu_custom_call.1} parent=11 // pred_check_branch
        %203 = sbr.rel (%p201) target = $region24
      $region23: #{tpu_custom_call.1} parent=11 // pred_region
        _
      $region24: #{tpu_custom_call.1} parent=11 // pred_fallthru
        _
    $region12: #{tpu_custom_call.1} parent=5 // pred_fallthru
      _
    %p204 = scmp.lt.s32.totalorder %s13, 4
    // Predicated region
    $region25: #{tpu_custom_call.1} parent=5 // pred_check
      %p205 = pneg %p204
    $region26: #{tpu_custom_call.1} parent=5 // pred_check_branch
      %207 = sbr.rel (%p205) target = $region28
    $region27: #{tpu_custom_call.1} parent=5 // pred_region
      // Predicated region
      $region29: #{tpu_custom_call.1} parent=27 // pred_check
        %p208 = pneg %p33
      $region30: #{tpu_custom_call.1} parent=27 // pred_check_branch
        %210 = sbr.rel (%p208) target = $region32
      $region31: #{tpu_custom_call.1} parent=27 // pred_region
        %s211 = smul.u32 2, %s13
        %p212 = scmp.lt.s32.totalorder %s211, 7
        %s213 = scalar_select %p212, %s211, 7
        %s214 = smul.addr %s213, 8
        %s215 = scalar_lea.vmem %s0, %s214
        %s216 = smul.u32 2, %s13
      $region32: #{tpu_custom_call.1} parent=27 // pred_fallthru
        _
      // Predicated region
      $region33: #{tpu_custom_call.1} parent=27 // pred_check
        %p217 = pneg %p59
      $region34: #{tpu_custom_call.1} parent=27 // pred_check_branch
        %219 = sbr.rel (%p217) target = $region36
      $region35: #{tpu_custom_call.1} parent=27 // pred_region
        %s220 = smul.u32 2, %s13
        %p221 = scmp.lt.s32.totalorder %s220, 7
        %s222 = scalar_select %p221, %s220, 7
        %s223 = smul.addr %s222, 8
        %s224 = scalar_lea.vmem %s1, %s223
        %s225 = smul.u32 2, %s13
      $region36: #{tpu_custom_call.1} parent=27 // pred_fallthru
        _
    $region28: #{tpu_custom_call.1} parent=5 // pred_fallthru
      _
    %p226 = scmp.le.s32.totalorder 1, %s13
    %p227 = scmp.lt.s32.totalorder %s13, 5
    %p228 = pnand %p226, %p227
    %p229 = pneg %p228
    // Predicated region
    $region37: #{tpu_custom_call.1} parent=5 // pred_check
      _
    $region38: #{tpu_custom_call.1} parent=5 // pred_check_branch
      %231 = sbr.rel (%p228) target = $region40
    $region39: #{tpu_custom_call.1} parent=5 // pred_region
      %s232 = ssub.s32 %s13, 1
      %s233 = smul.u32 2, %s18
      %p234 = scmp.lt.s32.totalorder %s233, 7
      %s235 = scalar_select %p234, %s233, 7
      %s236 = smul.addr %s235, 8
      %s237 = scalar_lea.vmem %s0, %s236
      %p238 = pneg %p39
      %p239 = pneg %p36
      %s240 = smul.u32 2, %s18
      %p241 = scmp.lt.s32.totalorder %s240, 7
      %s242 = scalar_select %p241, %s240, 7
      %s243 = smul.addr %s242, 8
      %s244 = scalar_lea.vmem %s1, %s243
      %p245 = pneg %p65
      %p246 = pneg %p62
      %p247 = pneg %p86
      %p248 = pneg %p83
      %p249 = pneg %p107
      %p250 = pneg %p104
      %p251 = pneg %p128
      %p252 = pneg %p125
      %p253 = pneg %p154
      %p254 = pneg %p151
      %s255 = smul.u32 2, %s18
      %p256 = scmp.lt.s32.totalorder %s255, 7
      %s257 = scalar_select %p256, %s255, 7
      %s258 = smul.addr %s257, 8
      %s259 = scalar_lea.vmem %s5, %s258
      %p260 = pneg %p180
      %p261 = pneg %p177
      %s262 = smul.u32 2, %s18
      %p263 = scmp.lt.s32.totalorder %s262, 7
      %s264 = scalar_select %p263, %s262, 7
      %s265 = smul.addr %s264, 8
      %s266 = scalar_lea.vmem %s6, %s265
      %s267 = smul.u32 2, %s18
      %p268 = scmp.lt.s32.totalorder %s267, 7
      %s269 = scalar_select %p268, %s267, 7
      %s270 = smul.addr %s269, 8
      %s271 = scalar_lea.vmem %s0, %s270
      %s272 = smul.u32 2, %s18
      %s273 = smul.u32 2, %s18
      %p274 = scmp.lt.s32.totalorder %s273, 7
      %s275 = scalar_select %p274, %s273, 7
      %s276 = smul.addr %s275, 8
      %s277 = scalar_lea.vmem %s1, %s276
      %s278 = smul.u32 2, %s18
      %s279 = smul.u32 2, %s18
      %p280 = scmp.lt.s32.totalorder %s279, 7
      %s281 = scalar_select %p280, %s279, 7
      %s282 = smul.addr %s281, 8
      %s283 = scalar_lea.vmem %s5, %s282
      %s284 = smul.u32 2, %s18
      %s285 = smul.u32 2, %s18
      %p286 = scmp.lt.s32.totalorder %s285, 7
      %s287 = scalar_select %p286, %s285, 7
      %s288 = smul.addr %s287, 8
      %s289 = scalar_lea.vmem %s6, %s288
      %s290 = smul.u32 2, %s18
      %v291 = vld [vmem:[%s271] sm:$0xff]
      %v292 = vld [vmem:[%s271 + $0x8] sm:$0xff]
      %v293 = vld [vmem:[%s277] sm:$0xff]
      %v294 = vld [vmem:[%s277 + $0x8] sm:$0xff]
      %v295 = vld [vmem:[%s3] sm:$0x3]
      %v296 = vld [vmem:[%s4] sm:$0x1]
      %v297 = vld [vmem:[%s2] sm:$0xff]
      %v298 = vld [vmem:[%s2 + $0x8] sm:$0xff]
      %v299 = vld [vmem:[%s2 + $0x10] sm:$0xff]
      %v300 = vld [vmem:[%s2 + $0x18] sm:$0xff]
      %vm301 = vcmask 261120
      %v303 = vsel %vm301, %v291, 0
      %v306 = vsel %vm301, %v292, 0
      %308 = vmatprep.subr.mxu0 0.0
      %309 = vmatpush1.msra.mxu0 %v297
      %310 = vmatprep.subr.mxu0 0.0
      %311 = vmatpush1.msra.mxu0 %v298
      %312 = vmatprep.subr.mxu0 0.0
      %313 = vmatpush1.msra.mxu0 %v299
      %314 = vmatprep.subr.mxu0 0.0
      %315 = vmatpush1.msra.mxu0 %v300
      %316 = vmatprep.subr.mxu0 0.0
      %317 = vmatpush1.msra.mxu0 0.0
      %318 = vmatprep.subr.mxu0 0.0
      %319 = vmatpush1.msra.mxu0 0.0
      %320 = vmatprep.subr.mxu0 0.0
      %321 = vmatpush1.msra.mxu0 0.0
      %322 = vmatprep.subr.mxu0 0.0
      %323 = vmatpush1.msra.mxu0 0.0
      %324 = vmatprep.subr.mxu0 0.0
      %325 = vmatpush1.msra.mxu0 0.0
      %326 = vmatprep.subr.mxu0 0.0
      %327 = vmatpush1.msra.mxu0 0.0
      %328 = vmatprep.subr.mxu0 0.0
      %329 = vmatpush1.msra.mxu0 0.0
      %330 = vmatprep.subr.mxu0 0.0
      %331 = vmatpush1.msra.mxu0 0.0
      %332 = vmatprep.subr.mxu0 0.0
      %333 = vmatpush1.msra.mxu0 0.0
      %334 = vmatprep.subr.mxu0 0.0
      %335 = vmatpush1.msra.mxu0 0.0
      %336 = vmatprep.subr.mxu0 0.0
      %337 = vmatpush1.msra.mxu0 0.0
      %338 = vmatprep.subr.mxu0 0.0
      %339 = vmatpush1.msra.mxu0 0.0
      %340 = vmatprep.subr.mxu0 0.0
      %341 = vmatpush1.msra.mxu0 0.0
      %342 = vmatprep.subr.mxu0 0.0
      %343 = vmatpush1.msra.mxu0 0.0
      %344 = vmatprep.subr.mxu0 0.0
      %345 = vmatpush1.msra.mxu0 0.0
      %346 = vmatprep.subr.mxu0 0.0
      %347 = vmatpush1.msra.mxu0 0.0
      %348 = vmatprep.subr.mxu0 0.0
      %349 = vmatpush1.msra.mxu0 0.0
      %350 = vmatprep.subr.mxu0 0.0
      %351 = vmatpush1.msra.mxu0 0.0
      %352 = vmatprep.subr.mxu0 0.0
      %353 = vmatpush1.msra.mxu0 0.0
      %354 = vmatprep.subr.mxu0 0.0
      %355 = vmatpush1.msra.mxu0 0.0
      %356 = vmatprep.subr.mxu0 0.0
      %357 = vmatpush1.msra.mxu0 0.0
      %358 = vmatprep.subr.mxu0 0.0
      %359 = vmatpush1.msra.mxu0 0.0
      %360 = vmatprep.subr.mxu0 0.0
      %361 = vmatpush1.msra.mxu0 0.0
      %362 = vmatprep.subr.mxu0 0.0
      %363 = vmatpush1.msra.mxu0 0.0
      %364 = vmatprep.subr.mxu0 0.0
      %365 = vmatpush1.msra.mxu0 0.0
      %366 = vmatprep.subr.mxu0 0.0
      %367 = vmatpush1.msra.mxu0 0.0
      %368 = vmatprep.subr.mxu0 0.0
      %369 = vmatpush1.msra.mxu0 0.0
      %370 = vmatprep.subr.mxu0 0.0
      %371 = vmatpush1.msra.mxu0 0.0
      %372 = vmatprep.mubr.f32.mxu0 0.0
      %373 = vmatmul.mubr.f32.gmra.mrb[0].mxu0 %v303
      %v374 = vpop.f32.mrb[0].mxu0
      %v375 = vadd.f32 0.0, %v374
      %v376 = vpop.f32.mrb[0].mxu0
      %377 = vmatprep.mubr.f32.mxu0 0.0
      %378 = vmatmul.mubr.f32.gmra.mrb[0].mxu0 %v306
      %v379 = vpop.f32.mrb[0].mxu0
      %v380 = vadd.f32 0.0, %v379
      %v381 = vpop.f32.mrb[0].mxu0
      %382 = vdwg.mxu0
      %v383 = vmul.f32 %v375, %v293
      %v384 = vmul.f32 %v380, %v294
      %v385 = vsel %vm301, %v383, 0.0
      %386 = vadd.xlane.f32.xlu0 %v385
      %v387 = vpop.xlane.xlu0 %386
      %v388 = vsel %vm301, %v384, 0.0
      %389 = vadd.xlane.f32.xlu0 %v388
      %v390 = vpop.xlane.xlu0 %389
      %v391 = vlaneseq
      %v392 = vshrl.u32 %v391, 7
      %v393 = vsub.s32 0, %v392
      %v394 = vrot.slane %v295, %v393
      %v395 = vmul.f32 %v387, %v394
      %v396 = vmul.f32 %v390, %v394
      %s397 = scalar_lea.vmem %s2, 32
      %v398 = vld [vmem:[%s397] sm:$0xff]
      %v399 = vld [vmem:[%s397 + $0x8] sm:$0xff]
      %v400 = vld [vmem:[%s397 + $0x10] sm:$0xff]
      %v401 = vld [vmem:[%s397 + $0x18] sm:$0xff]
      %402 = vmatprep.subr.mxu0 0.0
      %403 = vmatpush1.msra.mxu0 %v398
      %404 = vmatprep.subr.mxu0 0.0
      %405 = vmatpush1.msra.mxu0 %v399
      %406 = vmatprep.subr.mxu0 0.0
      %407 = vmatpush1.msra.mxu0 %v400
      %408 = vmatprep.subr.mxu0 0.0
      %409 = vmatpush1.msra.mxu0 %v401
      %410 = vmatprep.subr.mxu0 0.0
      %411 = vmatpush1.msra.mxu0 0.0
      %412 = vmatprep.subr.mxu0 0.0
      %413 = vmatpush1.msra.mxu0 0.0
      %414 = vmatprep.subr.mxu0 0.0
      %415 = vmatpush1.msra.mxu0 0.0
      %416 = vmatprep.subr.mxu0 0.0
      %417 = vmatpush1.msra.mxu0 0.0
      %418 = vmatprep.subr.mxu0 0.0
      %419 = vmatpush1.msra.mxu0 0.0
      %420 = vmatprep.subr.mxu0 0.0
      %421 = vmatpush1.msra.mxu0 0.0
      %422 = vmatprep.subr.mxu0 0.0
      %423 = vmatpush1.msra.mxu0 0.0
      %424 = vmatprep.subr.mxu0 0.0
      %425 = vmatpush1.msra.mxu0 0.0
      %426 = vmatprep.subr.mxu0 0.0
      %427 = vmatpush1.msra.mxu0 0.0
      %428 = vmatprep.subr.mxu0 0.0
      %429 = vmatpush1.msra.mxu0 0.0
      %430 = vmatprep.subr.mxu0 0.0
      %431 = vmatpush1.msra.mxu0 0.0
      %432 = vmatprep.subr.mxu0 0.0
      %433 = vmatpush1.msra.mxu0 0.0
      %434 = vmatprep.subr.mxu0 0.0
      %435 = vmatpush1.msra.mxu0 0.0
      %436 = vmatprep.subr.mxu0 0.0
      %437 = vmatpush1.msra.mxu0 0.0
      %438 = vmatprep.subr.mxu0 0.0
      %439 = vmatpush1.msra.mxu0 0.0
      %440 = vmatprep.subr.mxu0 0.0
      %441 = vmatpush1.msra.mxu0 0.0
      %442 = vmatprep.subr.mxu0 0.0
      %443 = vmatpush1.msra.mxu0 0.0
      %444 = vmatprep.subr.mxu0 0.0
      %445 = vmatpush1.msra.mxu0 0.0
      %446 = vmatprep.subr.mxu0 0.0
      %447 = vmatpush1.msra.mxu0 0.0
      %448 = vmatprep.subr.mxu0 0.0
      %449 = vmatpush1.msra.mxu0 0.0
      %450 = vmatprep.subr.mxu0 0.0
      %451 = vmatpush1.msra.mxu0 0.0
      %452 = vmatprep.subr.mxu0 0.0
      %453 = vmatpush1.msra.mxu0 0.0
      %454 = vmatprep.subr.mxu0 0.0
      %455 = vmatpush1.msra.mxu0 0.0
      %456 = vmatprep.subr.mxu0 0.0
      %457 = vmatpush1.msra.mxu0 0.0
      %458 = vmatprep.subr.mxu0 0.0
      %459 = vmatpush1.msra.mxu0 0.0
      %460 = vmatprep.subr.mxu0 0.0
      %461 = vmatpush1.msra.mxu0 0.0
      %462 = vmatprep.subr.mxu0 0.0
      %463 = vmatpush1.msra.mxu0 0.0
      %464 = vmatprep.subr.mxu0 0.0
      %465 = vmatpush1.msra.mxu0 0.0
      %466 = vmatprep.mubr.f32.mxu0 0.0
      %467 = vmatmul.mubr.f32.gmra.mrb[0].mxu0 %v303
      %v468 = vpop.f32.mrb[0].mxu0
      %v469 = vadd.f32 0.0, %v468
      %v470 = vpop.f32.mrb[0].mxu0
      %471 = vmatprep.mubr.f32.mxu0 0.0
      %472 = vmatmul.mubr.f32.gmra.mrb[0].mxu0 %v306
      %v473 = vpop.f32.mrb[0].mxu0
      %v474 = vadd.f32 0.0, %v473
      %v475 = vpop.f32.mrb[0].mxu0
      %476 = vdwg.mxu0
      %v477 = vmul.f32 %v469, %v293
      %v478 = vmul.f32 %v474, %v294
      %v479 = vsel %vm301, %v477, 0.0
      %480 = vadd.xlane.f32.xlu0 %v479
      %v481 = vpop.xlane.xlu0 %480
      %v482 = vsel %vm301, %v478, 0.0
      %483 = vadd.xlane.f32.xlu0 %v482
      %v484 = vpop.xlane.xlu0 %483
      %v485 = vlaneseq
      %v486 = vshrl.u32 %v485, 7
      %v487 = vsub.s32 1, %v486
      %v488 = vrot.slane %v295, %v487
      %v489 = vmul.f32 %v481, %v488
      %v490 = vmul.f32 %v484, %v488
      %v491 = vadd.f32 %v395, %v489
      %v492 = vadd.f32 %v396, %v490
      %vm493 = vcmask 23552
      %494 = vst.msk [vmem:[%s289] sm:$0xff] %vm493, %v491
      %495 = vst.msk [vmem:[%s289 + $0x8] sm:$0xff] %vm493, %v492
      %v496 = vsel %vm493, %v491, -inf
      %497 = vmax.xlane.f32.xlu0 %v496
      %v498 = vpop.xlane.xlu0 %497
      %v499 = vsel %vm493, %v492, -inf
      %500 = vmax.xlane.f32.xlu0 %v499
      %v501 = vpop.xlane.xlu0 %500
      %v502 = vsub.f32 %v491, %v498
      %v503 = vsub.f32 %v492, %v501
      %v504 = vmul.f32 %v502, 1.442695
      %v505 = vpow.pop %v504
      %v506 = vmul.f32 %v503, 1.442695
      %v507 = vpow.pop %v506
      %v508 = vsel %vm493, %v505, 0.0
      %509 = vadd.xlane.f32.xlu0 %v508
      %v510 = vpop.xlane.xlu0 %509
      %v511 = vsel %vm493, %v507, 0.0
      %512 = vadd.xlane.f32.xlu0 %v511
      %v513 = vpop.xlane.xlu0 %512
      %v514 = vrcp.pop %v510
      %v515 = vrcp.pop %v513
      %v516 = vmul.f32 %v510, %v514
      %v517 = vmul.f32 %v513, %v515
      %v518 = vsub.f32 2.0, %v516
      %v519 = vsub.f32 2.0, %v517
      %v520 = vmul.f32 %v514, %v518
      %v521 = vmul.f32 %v515, %v519
      %v522 = vmul.f32 %v505, %v520
      %v523 = vmul.f32 %v507, %v521
      %v525 = vlaneseq
      %v526 = vshrl.u32 %v525, 7
      %v527 = vsub.s32 0, %v526
      %v528 = vrot.slane %v296, %v527
      %v530 = vmul.f32 %v528, %v522
      %v531 = vmul.f32 %v528, %v523
      %v532 = vsel %vm493, %v530, 0.0
      %533 = vadd.xlane.f32.xlu0 %v532
      %v534 = vpop.xlane.xlu0 %533
      %v535 = vsel %vm493, %v531, 0.0
      %536 = vadd.xlane.f32.xlu0 %v535
      %v537 = vpop.xlane.xlu0 %536
      %vm538 = vcmask 7168
      %539 = vst.msk [vmem:[%s283] sm:$0xff] %vm538, %v534
      %540 = vst.msk [vmem:[%s283 + $0x8] sm:$0xff] %vm538, %v537
      %s541 = smul.u32 2, %s18
      %p542 = scmp.lt.s32.totalorder %s541, 7
      %s543 = scalar_select %p542, %s541, 7
      %s544 = smul.addr %s543, 8
      %s545 = scalar_lea.vmem %s5, %s544
      %s546 = smul.u32 2, %s18
      %p547 = scmp.lt.s32.totalorder %s546, 7
      %s548 = scalar_select %p547, %s546, 7
      %s549 = smul.addr %s548, 8
      %s550 = scalar_lea.vmem %s6, %s549
      // Predicated region
      $region41: #{tpu_custom_call.1} parent=39 // pred_check
        %p551 = pneg %p151
      $region42: #{tpu_custom_call.1} parent=39 // pred_check_branch
        %553 = sbr.rel (%p551) target = $region44
      $region43: #{tpu_custom_call.1} parent=39 // pred_region
        %s554 = smul.u32 2, %s18
      $region44: #{tpu_custom_call.1} parent=39 // pred_fallthru
        _
      // Predicated region
      $region45: #{tpu_custom_call.1} parent=39 // pred_check
        %p555 = pneg %p177
      $region46: #{tpu_custom_call.1} parent=39 // pred_check_branch
        %557 = sbr.rel (%p555) target = $region48
      $region47: #{tpu_custom_call.1} parent=39 // pred_region
        %s558 = smul.u32 2, %s18
      $region48: #{tpu_custom_call.1} parent=39 // pred_fallthru
        _
    $region40: #{tpu_custom_call.1} parent=5 // pred_fallthru
      _
    %p559 = scmp.le.s32.totalorder 2, %s13
    // Predicated region
    $region49: #{tpu_custom_call.1} parent=5 // pred_check
      %p560 = pneg %p559
    $region50: #{tpu_custom_call.1} parent=5 // pred_check_branch
      %562 = sbr.rel (%p560) target = $region52
    $region51: #{tpu_custom_call.1} parent=5 // pred_region
      %s563 = ssub.s32 %s13, 2
      // Predicated region
      $region53: #{tpu_custom_call.1} parent=51 // pred_check
        %p564 = pneg %p157
      $region54: #{tpu_custom_call.1} parent=51 // pred_check_branch
        %566 = sbr.rel (%p564) target = $region56
      $region55: #{tpu_custom_call.1} parent=51 // pred_region
        %s567 = smul.u32 2, %s19
        %p568 = scmp.lt.s32.totalorder %s567, 7
        %s569 = scalar_select %p568, %s567, 7
        %s570 = smul.addr %s569, 8
        %s571 = scalar_lea.vmem %s5, %s570
      $region56: #{tpu_custom_call.1} parent=51 // pred_fallthru
        _
      // Predicated region
      $region57: #{tpu_custom_call.1} parent=51 // pred_check
        %p572 = pneg %p183
      $region58: #{tpu_custom_call.1} parent=51 // pred_check_branch
        %574 = sbr.rel (%p572) target = $region60
      $region59: #{tpu_custom_call.1} parent=51 // pred_region
        %s575 = smul.u32 2, %s19
        %p576 = scmp.lt.s32.totalorder %s575, 7
        %s577 = scalar_select %p576, %s575, 7
        %s578 = smul.addr %s577, 8
        %s579 = scalar_lea.vmem %s6, %s578
      $region60: #{tpu_custom_call.1} parent=51 // pred_fallthru
        _
    $region52: #{tpu_custom_call.1} parent=5 // pred_fallthru
      _
  $region6: #{tpu_custom_call.1} parent=0 // loop_footer
    %s17 = sadd.s32 1, %s13
  $region7: #{tpu_custom_call.1} parent=0 // loop_footer_branch
    %12 = sbr.rel target = $region3
  $region8: #{tpu_custom_call.1} parent=0 // loop_exit
    _

</llo_original>
